<compile_context>
chip_gen: v7x
topology: tpu7x:2x2x1
jax: 0.10.0
libtpu: 0.0.40
codegen_flags: <defaults>
</compile_context>

<pallas_src>
import math

import jax
import jax.numpy as jnp
from jax.experimental import pallas as pl
from jax.experimental.pallas import tpu as pltpu

BERT_DIM = 768           # hard-coded in the torch module
NUM_LABELS = 16          # hard-coded in the torch module
NUM_LABELS_PAD = 128     # lane-dense fc output; sliced back to 16 outside the kernel
MAX_ROWS_PER_STEP = 256  # one full MXU M pass on v6e/v7x; amortizes per-step overhead


def _round_up(x, m):
    return ((x + m - 1) // m) * m


# ----------------------------------------------------------------------------
# Kernel 1: clause gather (masked_select of whole token rows) + fc (768 -> 16)
# ----------------------------------------------------------------------------
def _make_clause_fc_kernel(rows_per_step):
    def kernel(idx_ref, x_hbm, w_ref, b_ref, o_ref, rows, sem):
        # idx_ref : SMEM (n_pad,) i32      -- flat (b*S+s) indices of clause tokens
        # x_hbm   : HBM  (B*S, D) f32      -- full hidden state, never copied wholesale
        # w_ref   : VMEM (D, 128) bf16     -- fc weight, lane-padded
        # b_ref   : VMEM (1, 128) f32      -- fc bias, lane-padded
        # o_ref   : VMEM (ROWS, 128) bf16  -- logits block for this grid step
        # rows    : VMEM (2, ROWS, D) f32  -- double-buffered gather landing pad
        # sem     : DMA semaphores (2,)    -- one per buffer slot
        g = pl.program_id(0)
        n_steps = pl.num_programs(0)
        slot = g % 2

        def start_gather(group, dst_slot):
            base = group * rows_per_step

            @pl.loop(0, rows_per_step)
            def _(i):
                pltpu.make_async_copy(
                    x_hbm.at[pl.ds(idx_ref[base + i], 1), :],
                    rows.at[dst_slot, pl.ds(i, 1), :],
                    sem.at[dst_slot],
                ).start()

        def wait_gather(dst_slot):
            # All row copies of one group signal the same per-slot semaphore;
            # issue one equal-sized wait per row to drain it.
            @pl.loop(0, rows_per_step)
            def _(i):
                pltpu.make_async_copy(
                    x_hbm.at[pl.ds(0, 1), :],
                    rows.at[dst_slot, pl.ds(0, 1), :],
                    sem.at[dst_slot],
                ).wait()

        @pl.when(g == 0)
        def _():                      # prime the pipeline with group 0
            start_gather(0, 0)

        @pl.when(g + 1 < n_steps)
        def _():                      # prefetch group g+1 before blocking on g
            start_gather(g + 1, 1 - slot)

        wait_gather(slot)

        # (ROWS, 768) bf16 x (768, 128) bf16 -> f32 acc; lane-dense bf16 store.
        acc = jnp.dot(rows[slot].astype(jnp.bfloat16), w_ref[...],
                      preferred_element_type=jnp.float32)
        o_ref[...] = (acc + b_ref[...]).astype(o_ref.dtype)

    return kernel


def clause_fc(hidden_flat, idx_pad, w, b, *, rows_per_step):
    """hidden_flat: (B*S, D) f32 (stays in HBM); idx_pad: (n_pad,) i32.

    Returns (n_pad, NUM_LABELS_PAD) bf16 logits; caller slices [:, :NUM_LABELS].
    """
    n_pad = idx_pad.shape[0]
    assert n_pad % rows_per_step == 0
    d = hidden_flat.shape[1]
    # Lane-dense fc params: pad out_features 16 -> 128; weight in bf16 for MXU.
    w_pad = jnp.zeros((d, NUM_LABELS_PAD), jnp.bfloat16)
    w_pad = w_pad.at[:, : w.shape[1]].set(w.astype(jnp.bfloat16))
    b_pad = jnp.zeros((1, NUM_LABELS_PAD), jnp.float32)
    b_pad = b_pad.at[0, : b.shape[0]].set(b.astype(jnp.float32))

    grid_spec = pltpu.PrefetchScalarGridSpec(
        num_scalar_prefetch=1,
        grid=(n_pad // rows_per_step,),
        in_specs=[
            pl.BlockSpec(memory_space=pl.ANY),                        # hidden stays in HBM
            # Constant-index parameter blocks; on v7x add
            # pipeline_mode=pl.Buffered(1) to both to drop the redundant
            # second VMEM buffer (kept default here for maximal portability).
            pl.BlockSpec((d, NUM_LABELS_PAD), lambda g, idx: (0, 0)),  # fc weight
            pl.BlockSpec((1, NUM_LABELS_PAD), lambda g, idx: (0, 0)),  # fc bias
        ],
        out_specs=pl.BlockSpec((rows_per_step, NUM_LABELS_PAD),
                               lambda g, idx: (g, 0)),
        scratch_shapes=[
            pltpu.VMEM((2, rows_per_step, d), jnp.float32),
            pltpu.SemaphoreType.DMA((2,)),
        ],
    )
    return pl.pallas_call(
        _make_clause_fc_kernel(rows_per_step),
        out_shape=jax.ShapeDtypeStruct((n_pad, NUM_LABELS_PAD), jnp.bfloat16),
        grid_spec=grid_spec,
        # "arbitrary": the double-buffered gather carries state between
        # consecutive grid steps, so this axis must not be split across cores.
        compiler_params=pltpu.CompilerParams(
            dimension_semantics=("arbitrary",)),
    )(idx_pad, hidden_flat.astype(jnp.float32), w_pad, b_pad)


# ----------------------------------------------------------------------------
# Kernel 2: GraphConvolution (gc1/gc2/gc3 exist in __init__ of the torch module
# but are never used inside ClauseBert_GCN.forward; implemented for completeness).
# Two stages: (1) flattened projection text @ W over (B*N) rows, (2) per-batch,
# node-tiled adjacency aggregation with exact normalization + bias.
# ----------------------------------------------------------------------------
def _proj_kernel(x_ref, w_ref, o_ref):
    # (tm, D) bf16 x (D, Do) bf16 -> f32 acc -> bf16 store.
    o_ref[...] = jnp.dot(x_ref[...], w_ref[...],
                         preferred_element_type=jnp.float32).astype(o_ref.dtype)


def _gcn_agg_kernel(adj_ref, h_ref, b_ref, o_ref):
    # adj_ref: (1, tn, N) bf16, h_ref: (1, N, Do) bf16,
    # b_ref: (1, Do) f32, o_ref: (1, tn, Do) f32
    adj = adj_ref[0]
    # Degree sum accumulated in f32 (adj is bf16 0/1); exact division matches torch.
    denom = jnp.sum(adj.astype(jnp.float32), axis=-1, keepdims=True) + 1.0
    agg = jnp.dot(adj, h_ref[0], preferred_element_type=jnp.float32)
    o_ref[0] = agg / denom + b_ref[...]


def graph_convolution(text, adj, w, b, *, tm=256, tn=256):
    """text: (B, N, D), adj: (B, N, N) -> (B, N, Do)."""
    B, N, D = text.shape
    Do = w.shape[1]

    # ---- Stage 1: hidden = text @ W, flattened over B*N rows so a small
    # per-batch N still fills the MXU M dimension. ----
    M = B * N
    tm = min(tm, _round_up(M, 8))
    m_pad = _round_up(M, tm)
    x2d = jnp.zeros((m_pad, D), jnp.bfloat16)
    x2d = x2d.at[:M].set(text.reshape(M, D).astype(jnp.bfloat16))
    hidden = pl.pallas_call(
        _proj_kernel,
        out_shape=jax.ShapeDtypeStruct((m_pad, Do), jnp.bfloat16),
        grid_spec=pltpu.PrefetchScalarGridSpec(
            num_scalar_prefetch=0,
            grid=(m_pad // tm,),
            in_specs=[
                pl.BlockSpec((tm, D), lambda i: (i, 0)),
                # Constant-index weight block; on v7x add pipeline_mode=pl.Buffered(1).
                pl.BlockSpec((D, Do), lambda i: (0, 0)),
            ],
            out_specs=pl.BlockSpec((tm, Do), lambda i: (i, 0)),
        ),
        compiler_params=pltpu.CompilerParams(dimension_semantics=("parallel",)),
    )(x2d, w.astype(jnp.bfloat16))
    hidden = hidden[:M].reshape(B, N, Do)

    # ---- Stage 2: out = (adj @ hidden) / (deg + 1) + b, node axis tiled so the
    # adjacency block stays small under v7x's 64 MiB VMEM. ----
    # TODO(synk): for very large N (10K+), also tile the contraction (full-row
    # hidden block) with an f32 accumulator on an "arbitrary" grid axis.
    tn = min(tn, _round_up(N, 8))
    n_pad = _round_up(N, tn)
    adj_b = jnp.zeros((B, n_pad, N), jnp.bfloat16)
    adj_b = adj_b.at[:, :N, :].set(adj.astype(jnp.bfloat16))   # 0/1 exact in bf16
    out = pl.pallas_call(
        _gcn_agg_kernel,
        out_shape=jax.ShapeDtypeStruct((B, n_pad, Do), jnp.float32),
        grid_spec=pltpu.PrefetchScalarGridSpec(
            num_scalar_prefetch=0,
            grid=(B, n_pad // tn),
            in_specs=[
                pl.BlockSpec((1, tn, N), lambda bb, i: (bb, i, 0)),
                pl.BlockSpec((1, N, Do), lambda bb, i: (bb, 0, 0)),
                pl.BlockSpec((1, Do), lambda bb, i: (0, 0)),
            ],
            out_specs=pl.BlockSpec((1, tn, Do), lambda bb, i: (bb, i, 0)),
        ),
        compiler_params=pltpu.CompilerParams(
            dimension_semantics=("parallel", "parallel")),
    )(adj_b, hidden, b.reshape(1, -1).astype(jnp.float32))
    return out[:, :N, :]


# ----------------------------------------------------------------------------
# Module wrapper (parameter setup + glue in plain JAX)
# ----------------------------------------------------------------------------
class ClauseBertGCNPallas:
    def __init__(self, key):
        k1, k2, k3, k4 = jax.random.split(key, 4)
        stdv = 1.0 / math.sqrt(BERT_DIM)
        # GraphConvolution(768, 768) params (uniform(-stdv, stdv), like reset_parameters)
        self.gc_w = jax.random.uniform(k1, (BERT_DIM, BERT_DIM), jnp.float32, -stdv, stdv)
        self.gc_b = jax.random.uniform(k2, (BERT_DIM,), jnp.float32, -stdv, stdv)
        # fc = nn.Linear(768, 16)
        bound = 1.0 / math.sqrt(BERT_DIM)
        self.fc_w = jax.random.uniform(k3, (BERT_DIM, NUM_LABELS), jnp.float32, -bound, bound)
        self.fc_b = jax.random.uniform(k4, (NUM_LABELS,), jnp.float32, -bound, bound)

    def forward(self, sequence_output, c_idx, num_clauses, labels=None, loss_type="ce"):
        # TODO(synk): the BERT encoder (self.bert) is not re-implemented; the caller
        # supplies `sequence_output` == outputs['hidden_states'][-1], shape (B, S, 768).
        B, S, D = sequence_output.shape
        hidden_flat = sequence_output.reshape(B * S, D).astype(jnp.float32)

        # torch.masked_select(sequence_output, c_idx_mask == 1).view(-1, 768)
        # selects whole token rows where c_idx == 1, in (batch, seq) row-major order.
        # TODO(synk): masked_select has a data-dependent output size; `num_clauses`
        # must be the static true count.  Under jit (tracer c_idx) the check below is
        # skipped and a wrong count silently truncates / pads with row 0.
        if not isinstance(c_idx, jax.core.Tracer):
            actual = int(jnp.sum(c_idx.reshape(-1) == 1))
            assert actual == num_clauses, (
                f"num_clauses={num_clauses} does not match actual clause count {actual}")
        idx = jnp.nonzero(c_idx.reshape(-1) == 1, size=num_clauses,
                          fill_value=0)[0].astype(jnp.int32)

        # Up to 256 rows per grid step (one full MXU M pass on v6e/v7x); small
        # clause counts shrink the step instead of padding all the way to 256.
        rows_per_step = min(MAX_ROWS_PER_STEP, _round_up(num_clauses, 8))
        n_pad = _round_up(num_clauses, rows_per_step)
        idx_pad = jnp.pad(idx, (0, n_pad - num_clauses))

        # nn.Dropout(0.1) -> identity at inference time.
        logits_pad = clause_fc(hidden_flat, idx_pad, self.fc_w, self.fc_b,
                               rows_per_step=rows_per_step)
        logits = logits_pad[:num_clauses, :NUM_LABELS].astype(jnp.float32)

        if labels is None:
            return logits
        if loss_type == "ce":
            # CrossEntropyLoss (mean reduction) -- tiny glue reduction in plain JAX.
            logz = jax.nn.logsumexp(logits, axis=-1)
            picked = jnp.take_along_axis(
                logits, labels[:, None].astype(jnp.int32), axis=-1)[:, 0]
            loss = jnp.mean(logz - picked)
        else:
            # TODO(synk): Focal_loss branch not implemented (class not provided);
            # the num_labels==1 MSE branch is unreachable (num_labels fixed at 16).
            raise NotImplementedError("only loss_type='ce' is implemented")
        return loss, logits, labels


if __name__ == "__main__":
    key = jax.random.PRNGKey(0)
    kp, kh, kl, kt, ka = jax.random.split(key, 5)

    B, S = 2, 8
    model = ClauseBertGCNPallas(kp)

    # Synthetic "BERT last hidden state" (stand-in for self.bert output).
    sequence_output = jax.random.normal(kh, (B, S, BERT_DIM), jnp.float32)

    # c_idx marks clause tokens: 3 per sequence -> 6 selected rows total.
    c_idx = jnp.zeros((B, S), jnp.int32)
    c_idx = c_idx.at[0, jnp.array([1, 3, 5])].set(1)
    c_idx = c_idx.at[1, jnp.array([0, 2, 6])].set(1)
    num_clauses = 6
    labels = jax.random.randint(kl, (num_clauses,), 0, NUM_LABELS)

    loss, logits, _ = model.forward(sequence_output, c_idx, num_clauses, labels=labels)
    jax.block_until_ready((loss, logits))

    # Reference check for the gather + fc kernel (bf16 MXU + bf16 store -> loose tol).
    hid = sequence_output.reshape(-1, BERT_DIM)
    sel = hid[jnp.nonzero(c_idx.reshape(-1) == 1, size=num_clauses)[0]]
    ref_logits = sel @ model.fc_w + model.fc_b
    assert jnp.allclose(logits, ref_logits, atol=3e-2, rtol=3e-2), "fc kernel mismatch"

    # Standalone GraphConvolution kernel check (gc layers are unused in the torch
    # forward; implemented here for completeness).
    Nn = 8
    text = jax.random.normal(kt, (B, Nn, BERT_DIM), jnp.float32)
    adj = (jax.random.uniform(ka, (B, Nn, Nn)) > 0.5).astype(jnp.float32)
    gcn_out = graph_convolution(text, adj, model.gc_w, model.gc_b)
    jax.block_until_ready(gcn_out)
    ref_h = jnp.einsum("bnd,de->bne", text, model.gc_w)
    ref_gcn = (jnp.einsum("bnm,bme->bne", adj, ref_h)
               / (adj.sum(-1, keepdims=True) + 1.0) + model.gc_b)
    assert jnp.allclose(gcn_out, ref_gcn, atol=3e-2, rtol=3e-2), "gcn kernel mismatch"

    print("KERNEL_OK")
</pallas_src>

<mosaic_0001>
module attributes {stable_mosaic.version = 11 : i64} {
  func.func @kernel(%arg0: i32, %arg1: memref<8xi32, #tpu.memory_space<smem>>, %arg2: memref<16x768xf32, #tpu.memory_space<any>>, %arg3: memref<768x128xbf16, #tpu.memory_space<vmem>>, %arg4: memref<1x128xf32, #tpu.memory_space<vmem>>, %arg5: memref<8x128xbf16, #tpu.memory_space<vmem>>, %arg6: memref<2x8x768xf32, #tpu.memory_space<vmem>>, %arg7: memref<2x!tpu.dma_semaphore, #tpu.memory_space<semaphore_mem>>) attributes {dimension_semantics = [#tpu.dimension_semantics<arbitrary>], iteration_bounds = array<i64: 1>, scalar_prefetch = 1 : i64, scratch_operands = 2 : i64, tpu.core_type = #tpu.core_type<tc>, window_params = [{}, {pipeline_mode = #tpu.pipeline_mode<synchronous>, transform_indices = @transform_1, window_bounds = array<i64: 768, 128>}, {pipeline_mode = #tpu.pipeline_mode<synchronous>, transform_indices = @transform_2, window_bounds = array<i64: 1, 128>}, {transform_indices = @transform_3, window_bounds = array<i64: 8, 128>}]} {
    %c2_i32 = arith.constant 2 : i32
    %c0_i32 = arith.constant 0 : i32
    %0 = arith.cmpi eq, %c2_i32, %c0_i32 : i32
    %c1_i32 = arith.constant 1 : i32
    %1 = arith.select %0, %c1_i32, %c2_i32 : i32
    %2 = arith.remsi %arg0, %1 : i32
    %c0_i32_0 = arith.constant 0 : i32
    %3 = arith.cmpi ne, %2, %c0_i32_0 : i32
    %c0_i32_1 = arith.constant 0 : i32
    %4 = arith.cmpi slt, %2, %c0_i32_1 : i32
    %c0_i32_2 = arith.constant 0 : i32
    %5 = arith.cmpi slt, %1, %c0_i32_2 : i32
    %6 = arith.xori %4, %5 : i1
    %7 = arith.andi %6, %3 : i1
    %8 = arith.addi %2, %1 : i32
    %9 = arith.select %7, %8, %2 : i32
    %c0_i32_3 = arith.constant 0 : i32
    %10 = arith.cmpi eq, %arg0, %c0_i32_3 : i32
    %11 = arith.extui %10 : i1 to i32
    %c0_i32_4 = arith.constant 0 : i32
    %12 = arith.cmpi ne, %11, %c0_i32_4 : i32
    scf.if %12 {
      %c0_i32_17 = arith.constant 0 : i32
      %c8_i32_18 = arith.constant 8 : i32
      %29 = arith.addi %c0_i32_17, %c8_i32_18 : i32
      %c1_i32_19 = arith.constant 1 : i32
      scf.for %arg8 = %c0_i32_17 to %29 step %c1_i32_19  : i32 {
        %c1_i32_21 = arith.constant 1 : i32
        %30 = arith.muli %arg8, %c1_i32_21 : i32
        %c0_i32_22 = arith.constant 0 : i32
        %31 = arith.addi %c0_i32_22, %30 : i32
        %c0_i32_23 = arith.constant 0 : i32
        %32 = arith.addi %c0_i32_23, %31 : i32
        %33 = arith.index_cast %32 : i32 to index
        %34 = memref.load %arg1[%33] : memref<8xi32, #tpu.memory_space<smem>>
        %c0_i32_24 = arith.constant 0 : i32
        %c0_i32_25 = arith.constant 0 : i32
        %c0_i32_26 = arith.constant 0 : i32
        %35 = tpu.memref_slice %arg2[%34, %c0_i32_26] : memref<16x768xf32, #tpu.memory_space<any>> -> memref<1x768xf32, #tpu.memory_space<any>>
        %c0_i32_27 = arith.constant 0 : i32
        %36 = tpu.memref_slice %arg6[%c0_i32_24, %31, %c0_i32_27] : memref<2x8x768xf32, #tpu.memory_space<vmem>> -> memref<1x1x768xf32, #tpu.memory_space<vmem>>
        %37 = tpu.memref_squeeze %36 : memref<1x1x768xf32, #tpu.memory_space<vmem>> -> memref<1x768xf32, #tpu.memory_space<vmem>>
        %38 = tpu.memref_slice %arg7[%c0_i32_25] : memref<2x!tpu.dma_semaphore, #tpu.memory_space<semaphore_mem>> -> memref<1x!tpu.dma_semaphore, #tpu.memory_space<semaphore_mem>>
        %39 = tpu.memref_squeeze %38 : memref<1x!tpu.dma_semaphore, #tpu.memory_space<semaphore_mem>> -> memref<!tpu.dma_semaphore, #tpu.memory_space<semaphore_mem>>
        tpu.enqueue_dma source(%35 : memref<1x768xf32, #tpu.memory_space<any>>) target(%37 : memref<1x768xf32, #tpu.memory_space<vmem>>) target_semaphore(%39 : memref<!tpu.dma_semaphore, #tpu.memory_space<semaphore_mem>>)
      }
      %c8_i32_20 = arith.constant 8 : i32
    } else {
    }
    %c1_i32_5 = arith.constant 1 : i32
    %13 = arith.addi %arg0, %c1_i32_5 : i32
    %c1_i32_6 = arith.constant 1 : i32
    %14 = arith.cmpi slt, %13, %c1_i32_6 : i32
    %15 = arith.extui %14 : i1 to i32
    %c0_i32_7 = arith.constant 0 : i32
    %16 = arith.cmpi ne, %15, %c0_i32_7 : i32
    scf.if %16 {
      %c1_i32_17 = arith.constant 1 : i32
      %29 = arith.addi %arg0, %c1_i32_17 : i32
      %c1_i32_18 = arith.constant 1 : i32
      %30 = arith.subi %c1_i32_18, %9 : i32
      %c8_i32_19 = arith.constant 8 : i32
      %31 = arith.muli %29, %c8_i32_19 : i32
      %c0_i32_20 = arith.constant 0 : i32
      %c8_i32_21 = arith.constant 8 : i32
      %32 = arith.addi %c0_i32_20, %c8_i32_21 : i32
      %c1_i32_22 = arith.constant 1 : i32
      scf.for %arg8 = %c0_i32_20 to %32 step %c1_i32_22  : i32 {
        %c1_i32_24 = arith.constant 1 : i32
        %33 = arith.muli %arg8, %c1_i32_24 : i32
        %c0_i32_25 = arith.constant 0 : i32
        %34 = arith.addi %c0_i32_25, %33 : i32
        %35 = arith.addi %31, %34 : i32
        %36 = arith.index_cast %35 : i32 to index
        %37 = memref.load %arg1[%36] : memref<8xi32, #tpu.memory_space<smem>>
        %c0_i32_26 = arith.constant 0 : i32
        %38 = tpu.memref_slice %arg2[%37, %c0_i32_26] : memref<16x768xf32, #tpu.memory_space<any>> -> memref<1x768xf32, #tpu.memory_space<any>>
        %c0_i32_27 = arith.constant 0 : i32
        %39 = tpu.memref_slice %arg6[%30, %34, %c0_i32_27] : memref<2x8x768xf32, #tpu.memory_space<vmem>> -> memref<1x1x768xf32, #tpu.memory_space<vmem>>
        %40 = tpu.memref_squeeze %39 : memref<1x1x768xf32, #tpu.memory_space<vmem>> -> memref<1x768xf32, #tpu.memory_space<vmem>>
        %41 = tpu.memref_slice %arg7[%30] : memref<2x!tpu.dma_semaphore, #tpu.memory_space<semaphore_mem>> -> memref<1x!tpu.dma_semaphore, #tpu.memory_space<semaphore_mem>>
        %42 = tpu.memref_squeeze %41 : memref<1x!tpu.dma_semaphore, #tpu.memory_space<semaphore_mem>> -> memref<!tpu.dma_semaphore, #tpu.memory_space<semaphore_mem>>
        tpu.enqueue_dma source(%38 : memref<1x768xf32, #tpu.memory_space<any>>) target(%40 : memref<1x768xf32, #tpu.memory_space<vmem>>) target_semaphore(%42 : memref<!tpu.dma_semaphore, #tpu.memory_space<semaphore_mem>>)
      }
      %c8_i32_23 = arith.constant 8 : i32
    } else {
    }
    %c0_i32_8 = arith.constant 0 : i32
    %c8_i32 = arith.constant 8 : i32
    %17 = arith.addi %c0_i32_8, %c8_i32 : i32
    %c1_i32_9 = arith.constant 1 : i32
    scf.for %arg8 = %c0_i32_8 to %17 step %c1_i32_9  : i32 {
      %c0_i32_17 = arith.constant 0 : i32
      %c0_i32_18 = arith.constant 0 : i32
      %29 = tpu.memref_slice %arg2[%c0_i32_17, %c0_i32_18] : memref<16x768xf32, #tpu.memory_space<any>> -> memref<1x768xf32, #tpu.memory_space<any>>
      %c0_i32_19 = arith.constant 0 : i32
      %c0_i32_20 = arith.constant 0 : i32
      %30 = tpu.memref_slice %arg6[%9, %c0_i32_19, %c0_i32_20] : memref<2x8x768xf32, #tpu.memory_space<vmem>> -> memref<1x1x768xf32, #tpu.memory_space<vmem>>
      %31 = tpu.memref_squeeze %30 : memref<1x1x768xf32, #tpu.memory_space<vmem>> -> memref<1x768xf32, #tpu.memory_space<vmem>>
      %32 = tpu.memref_slice %arg7[%9] : memref<2x!tpu.dma_semaphore, #tpu.memory_space<semaphore_mem>> -> memref<1x!tpu.dma_semaphore, #tpu.memory_space<semaphore_mem>>
      %33 = tpu.memref_squeeze %32 : memref<1x!tpu.dma_semaphore, #tpu.memory_space<semaphore_mem>> -> memref<!tpu.dma_semaphore, #tpu.memory_space<semaphore_mem>>
      tpu.wait_dma2 semaphore(%33 : memref<!tpu.dma_semaphore, #tpu.memory_space<semaphore_mem>>) src(%29 : memref<1x768xf32, #tpu.memory_space<any>>) dst(%31 : memref<1x768xf32, #tpu.memory_space<vmem>>)
    }
    %18 = arith.index_cast %9 : i32 to index
    %c0 = arith.constant 0 : index
    %c0_10 = arith.constant 0 : index
    %19 = vector.load %arg6[%18, %c0, %c0_10] : memref<2x8x768xf32, #tpu.memory_space<vmem>>, vector<1x8x768xf32>
    %20 = vector.shape_cast %19 : vector<1x8x768xf32> to vector<8x768xf32>
    %21 = arith.truncf %20 : vector<8x768xf32> to vector<8x768xbf16>
    %c0_11 = arith.constant 0 : index
    %c0_12 = arith.constant 0 : index
    %22 = vector.load %arg3[%c0_11, %c0_12] : memref<768x128xbf16, #tpu.memory_space<vmem>>, vector<768x128xbf16>
    %cst = arith.constant dense<0.000000e+00> : vector<8x128xf32>
    %23 = tpu.matmul %21, %22, %cst {dimension_numbers = #tpu.dot_dimension_numbers<[1], [0], [0], [1], [0, 0, 1, 1], [], []>} : vector<8x768xbf16>, vector<768x128xbf16>, vector<8x128xf32> -> vector<8x128xf32>
    %c0_13 = arith.constant 0 : index
    %c0_14 = arith.constant 0 : index
    %24 = vector.load %arg4[%c0_13, %c0_14] : memref<1x128xf32, #tpu.memory_space<vmem>>, vector<1x128xf32>
    %25 = vector.broadcast %24 : vector<1x128xf32> to vector<8x128xf32>
    %26 = arith.addf %23, %25 : vector<8x128xf32>
    %27 = arith.truncf %26 : vector<8x128xf32> to vector<8x128xbf16>
    %c0_15 = arith.constant 0 : index
    %c0_16 = arith.constant 0 : index
    %28 = vector.load %arg5[%c0_15, %c0_16] : memref<8x128xbf16, #tpu.memory_space<vmem>>, vector<8x128xbf16>
    tpu.vector_store %arg5[%c0_15, %c0_16], %27 {strides = array<i32>} : memref<8x128xbf16, #tpu.memory_space<vmem>>, vector<8x128xbf16>,
    return
  }
  func.func @transform_1(%arg0: i32, %arg1: memref<8xi32, #tpu.memory_space<smem>>) -> (i32, i32) {
    %c0_i32 = arith.constant 0 : i32
    %c0_i32_0 = arith.constant 0 : i32
    %c0_i32_1 = arith.constant 0 : i32
    return %c0_i32, %c0_i32_0 : i32, i32
  }
  func.func @transform_2(%arg0: i32, %arg1: memref<8xi32, #tpu.memory_space<smem>>) -> (i32, i32) {
    %c0_i32 = arith.constant 0 : i32
    %c0_i32_0 = arith.constant 0 : i32
    %c0_i32_1 = arith.constant 0 : i32
    return %c0_i32, %c0_i32_0 : i32, i32
  }
  func.func @transform_3(%arg0: i32, %arg1: memref<8xi32, #tpu.memory_space<smem>>) -> (i32, i32) {
    %c0_i32 = arith.constant 0 : i32
    %c0_i32_0 = arith.constant 0 : i32
    return %arg0, %c0_i32 : i32, i32
  }
}

</mosaic_0001>

<llo_original>
// kernel: tpu_custom_call.1
$region0: #{tpu_custom_call.1}
  #allocation0 [shape = 'u32[]', space=smem, size = 0x4, offset = 0x4, fixed_abs, tag = 'smem constant byte address 0x4 - core index']
  #allocation1 [shape = 'u32[144,128]{1,0:T(1,128)}', space=vmem, size = 0x12000, scoped, tag = 'internal scratch']
  #allocation2 [shape = 'f32[2,8,768]{2,1,0:T(8,128)}', space=vmem, size = 0xc000, scoped, tag = 'scratch operand']
  #allocation3 [shape = 's32[2]{0}', space=sflag, size = 0x8, scoped, tag = 'scratch operand']
  #allocation4 [shape = 's32[1]{0}', space=sflag, size = 0x4, scoped, tag = 'scoped memory for tpu_custom_call.1']
  #allocation5 [shape = 'u8[512]{0}', space=smem, size = 0x200, scoped, tag = 'prefetched SMEM operand 0']
  #allocation10 [shape = 's32[]', space=sflag, size = 0x4, offset = 0, fixed_abs, tag = 'sflag constant byte address 0x0 - dummy sync flag']
  #allocation11 [shape = 's32[]', space=sflag, size = 0x4, offset = 0, fixed_abs, tag = 'sflag constant byte address 0x0 - dummy sync flag']
  %s0 = inlined_call_operand.hbm [shape: s32[8], index: 0, kind: input, shape index: {}]
  %s1 = inlined_call_operand.hbm [shape: f32[16,768], index: 1, kind: input, shape index: {}]
  %s2 = inlined_call_operand.hbm [shape: bf16[768,128], index: 2, kind: input, shape index: {}]
  %s3 = inlined_call_operand.vmem [shape: f32[1,128], index: 3, kind: input, shape index: {}]
  %s4 = inlined_call_operand.hbm [shape: bf16[8,128], index: 4, kind: output, shape index: {}]
  %s5 = sld [smem:[#allocation0]]
  $region51: #{tpu_custom_call.1} parent=0
    _
  %s7 = ssub.s32 1, %s5
  %s8 = scalar_select 0, %s7, %s5
  %10 = dma.hbm_to_smem %s0, 16, [#allocation5], [#allocation4]
  %11 = dma.done [#allocation4], 16
  %12 = sfence
  $region1: #{tpu_custom_call.1} parent=0
    #allocation6 [shape = 'u8[196608]{0}', space=vmem, size = 0x30000, scoped, tag = 'input window, operand 2, single buffered']
    #allocation7 [shape = 's32[1]{0}', space=sflag, size = 0x4, scoped, tag = 'scoped memory for tpu_custom_call.1']
    #allocation8 [shape = 's32[1]{0}', space=sflag, size = 0x4, scoped, tag = 'scoped memory for tpu_custom_call.1']
    #allocation9 [shape = 'u8[2048]{0}', space=vmem, size = 0x800, scoped, tag = 'output window, operand 0, single buffered']
    %13 = vsyncpa [#allocation7], 0
    %14 = vsyncpa [#allocation8], 0
    // Predicated region
    $region2: #{tpu_custom_call.1} parent=1 // pred_check
      _
    $region3: #{tpu_custom_call.1} parent=1 // pred_check_branch
      %16 = sbr.rel (0) target = $region5
    $region4: #{tpu_custom_call.1} parent=1 // pred_region
      %s18 = ssub.s32 6144, 6144
      %19 = vsyncadd [#allocation7], %s18
      %s20 = sshll.u32 [#allocation6], 4
      %s21 = int_to_ptr.vmem [resolvable:$true] %s20
      %26 = dma.hbm_to_vmem [thread:$0]  %s2, 6144, %s21, [#allocation7], 64, 64, 4
    $region5: #{tpu_custom_call.1} parent=1 // pred_fallthru
      _
    // Predicated region
    $region6: #{tpu_custom_call.1} parent=1 // pred_check
      _
    $region7: #{tpu_custom_call.1} parent=1 // pred_check_branch
      %28 = sbr.rel (0) target = $region9
    $region8: #{tpu_custom_call.1} parent=1 // pred_region
      _
    $region9: #{tpu_custom_call.1} parent=1 // pred_fallthru
      _
    // Predicated region
    $region10: #{tpu_custom_call.1} parent=1 // pred_check
      _
    $region11: #{tpu_custom_call.1} parent=1 // pred_check_branch
      %30 = sbr.rel (0) target = $region13
    $region12: #{tpu_custom_call.1} parent=1 // pred_region
      %31 = dma.done [#allocation7], 6144
    $region13: #{tpu_custom_call.1} parent=1 // pred_fallthru
      _
    %s33 = ssub.s32 0, 0
    %s34 = ssub.s32 0, 0
    %p35 = scmp.ne.s32.totalorder 0, 0
    %p36 = scmp.lt.s32.totalorder 0, 0
    %p37 = pnand %p36, %p35
    %p38 = pneg %p37
    %s39 = sadd.s32 0, 2
    %s40 = scalar_select %p38, %s39, 0
    %p41 = scmp.eq.s32.totalorder 0, 0
    // Predicated region
    $region14: #{tpu_custom_call.1} parent=1 // pred_check
      %p42 = pneg %p41
    $region15: #{tpu_custom_call.1} parent=1 // pred_check_branch
      %44 = sbr.rel (%p42) target = $region17
    $region16: #{tpu_custom_call.1} parent=1 // pred_region
      loop: start=0, step=1, limit=8
      $region18: #{tpu_custom_call.1} parent=16 // loop_pre_header
        _
      $region19: #{tpu_custom_call.1} parent=16 // loop_header
        %s46 = sphi 0, %s50
        %p47 = scmp.ge.s32.totalorder %s46, 8
      $region20: #{tpu_custom_call.1} parent=16 // loop_header_branch
        %49 = sbr.rel (%p47) target = $region24
      $region21: #{tpu_custom_call.1} parent=16 // loop_body
        %s51 = sld [smem:[#allocation5 + %s46]]
        %s52 = sshrl.u32 %s51, 3
        %s53 = sand.u32 %s51, 7
        %s54 = smul.u32 %s52, 48
        %s55 = sadd.s32 %s53, %s54
        %s56 = smul.addr %s55, 16
        %s57 = scalar_lea.hbm %s1, %s56
        %s58 = sshrl.u32 %s46, 3
        %s59 = sand.u32 %s46, 7
        %s60 = smul.u32 %s58, 48
        %s61 = sadd.s32 %s59, %s60
        %s62 = scalar_lea.vmem [#allocation2], %s61
        %s64 = sshll.u32 %s62, 4
        %s65 = int_to_ptr.vmem [resolvable:$true] %s64
        %67 = dma.hbm_to_vmem [thread:$0]  %s57, 96, %s65, [#allocation3], 128, 128, 1
      $region22: #{tpu_custom_call.1} parent=16 // loop_footer
        %s50 = sadd.s32 1, %s46
      $region23: #{tpu_custom_call.1} parent=16 // loop_footer_branch
        %45 = sbr.rel target = $region19
      $region24: #{tpu_custom_call.1} parent=16 // loop_exit
        _
    $region17: #{tpu_custom_call.1} parent=1 // pred_fallthru
      _
    %s68 = sadd.s32 0, 1
    %p69 = scmp.lt.s32.totalorder %s68, 1
    // Predicated region
    $region25: #{tpu_custom_call.1} parent=1 // pred_check
      %p70 = pneg %p69
    $region26: #{tpu_custom_call.1} parent=1 // pred_check_branch
      %72 = sbr.rel (%p70) target = $region28
    $region27: #{tpu_custom_call.1} parent=1 // pred_region
      %s73 = ssub.s32 1, %s40
      %s74 = smul.u32 %s68, 8
      loop: start=0, step=1, limit=8
      $region29: #{tpu_custom_call.1} parent=27 // loop_pre_header
        _
      $region30: #{tpu_custom_call.1} parent=27 // loop_header
        %s76 = sphi 0, %s80
        %p77 = scmp.ge.s32.totalorder %s76, 8
      $region31: #{tpu_custom_call.1} parent=27 // loop_header_branch
        %79 = sbr.rel (%p77) target = $region35
      $region32: #{tpu_custom_call.1} parent=27 // loop_body
        %s81 = sadd.s32 %s74, %s76
        %s82 = sld [smem:[#allocation5 + %s81]]
        %s83 = sshrl.u32 %s82, 3
        %s84 = sand.u32 %s82, 7
        %s85 = smul.u32 %s83, 48
        %s86 = sadd.s32 %s84, %s85
        %s87 = smul.addr %s86, 16
        %s88 = scalar_lea.hbm %s1, %s87
        %s89 = sshrl.u32 %s76, 3
        %s90 = sand.u32 %s76, 7
        %s91 = smul.u32 %s89, 48
        %s92 = sadd.s32 %s90, %s91
        %s93 = smul.u32 %s73, 48
        %s94 = sadd.s32 %s92, %s93
        %s95 = scalar_lea.vmem [#allocation2], %s94
        %s96 = scalar_lea.sflag [#allocation3], %s73
        %s98 = sshll.u32 %s95, 4
        %s99 = int_to_ptr.vmem [resolvable:$true] %s98
        %101 = dma.hbm_to_vmem [thread:$0]  %s88, 96, %s99, %s96, 128, 128, 1
      $region33: #{tpu_custom_call.1} parent=27 // loop_footer
        %s80 = sadd.s32 1, %s76
      $region34: #{tpu_custom_call.1} parent=27 // loop_footer_branch
        %75 = sbr.rel target = $region30
      $region35: #{tpu_custom_call.1} parent=27 // loop_exit
        _
    $region28: #{tpu_custom_call.1} parent=1 // pred_fallthru
      _
    loop: start=0, step=1, limit=8
    $region36: #{tpu_custom_call.1} parent=1 // loop_pre_header
      _
    $region37: #{tpu_custom_call.1} parent=1 // loop_header
      %s103 = sphi 0, %s107
      %p104 = scmp.ge.s32.totalorder %s103, 8
    $region38: #{tpu_custom_call.1} parent=1 // loop_header_branch
      %106 = sbr.rel (%p104) target = $region42
    $region39: #{tpu_custom_call.1} parent=1 // loop_body
      %s108 = scalar_lea.sflag [#allocation3], %s40
      %s109 = smul.u32 1, 6
      %s110 = sshll.u32 %s109, 4
      %111 = dma.done %s108, %s110
    $region40: #{tpu_custom_call.1} parent=1 // loop_footer
      %s107 = sadd.s32 1, %s103
    $region41: #{tpu_custom_call.1} parent=1 // loop_footer_branch
      %102 = sbr.rel target = $region37
    $region42: #{tpu_custom_call.1} parent=1 // loop_exit
      _
    %s112 = smul.u32 %s40, 6
    %s113 = smul.addr %s112, 8
    %s114 = scalar_lea.vmem [#allocation2], %s113
    %v115 = vld [vmem:[%s114] sm:$0xff]
    %v116 = vld [vmem:[%s114 + $0x8] sm:$0xff]
    %v117 = vld [vmem:[%s114 + $0x10] sm:$0xff]
    %v118 = vld [vmem:[%s114 + $0x18] sm:$0xff]
    %v119 = vld [vmem:[%s114 + $0x20] sm:$0xff]
    %v120 = vld [vmem:[%s114 + $0x28] sm:$0xff]
    %v121 = vpack.c.bf16 %v115, %v115
    %v122 = vpack.c.bf16 %v116, %v116
    %v123 = vpack.c.bf16 %v117, %v117
    %v124 = vpack.c.bf16 %v118, %v118
    %v125 = vpack.c.bf16 %v119, %v119
    %v126 = vpack.c.bf16 %v120, %v120
    %v127 = vld [vmem:[#allocation6] sm:$0xf]
    %v128 = vld [vmem:[#allocation6 + $0x4] sm:$0xf]
    %v129 = vld [vmem:[#allocation6 + $0x8] sm:$0xf]
    %v130 = vld [vmem:[#allocation6 + $0xc] sm:$0xf]
    %v131 = vld [vmem:[#allocation6 + $0x10] sm:$0xf]
    %v132 = vld [vmem:[#allocation6 + $0x14] sm:$0xf]
    %v133 = vld [vmem:[#allocation6 + $0x18] sm:$0xf]
    %v134 = vld [vmem:[#allocation6 + $0x1c] sm:$0xf]
    %v135 = vld [vmem:[#allocation6 + $0x20] sm:$0xf]
    %v136 = vld [vmem:[#allocation6 + $0x24] sm:$0xf]
    %v137 = vld [vmem:[#allocation6 + $0x28] sm:$0xf]
    %v138 = vld [vmem:[#allocation6 + $0x2c] sm:$0xf]
    %v139 = vld [vmem:[#allocation6 + $0x30] sm:$0xf]
    %v140 = vld [vmem:[#allocation6 + $0x34] sm:$0xf]
    %v141 = vld [vmem:[#allocation6 + $0x38] sm:$0xf]
    %v142 = vld [vmem:[#allocation6 + $0x3c] sm:$0xf]
    %v143 = vld [vmem:[#allocation6 + $0x40] sm:$0xf]
    %v144 = vld [vmem:[#allocation6 + $0x44] sm:$0xf]
    %v145 = vld [vmem:[#allocation6 + $0x48] sm:$0xf]
    %v146 = vld [vmem:[#allocation6 + $0x4c] sm:$0xf]
    %v147 = vld [vmem:[#allocation6 + $0x50] sm:$0xf]
    %v148 = vld [vmem:[#allocation6 + $0x54] sm:$0xf]
    %v149 = vld [vmem:[#allocation6 + $0x58] sm:$0xf]
    %v150 = vld [vmem:[#allocation6 + $0x5c] sm:$0xf]
    %v151 = vld [vmem:[#allocation6 + $0x60] sm:$0xf]
    %v152 = vld [vmem:[#allocation6 + $0x64] sm:$0xf]
    %v153 = vld [vmem:[#allocation6 + $0x68] sm:$0xf]
    %v154 = vld [vmem:[#allocation6 + $0x6c] sm:$0xf]
    %v155 = vld [vmem:[#allocation6 + $0x70] sm:$0xf]
    %v156 = vld [vmem:[#allocation6 + $0x74] sm:$0xf]
    %v157 = vld [vmem:[#allocation6 + $0x78] sm:$0xf]
    %v158 = vld [vmem:[#allocation6 + $0x7c] sm:$0xf]
    %v159 = vld [vmem:[#allocation6 + $0x80] sm:$0xf]
    %v160 = vld [vmem:[#allocation6 + $0x84] sm:$0xf]
    %v161 = vld [vmem:[#allocation6 + $0x88] sm:$0xf]
    %v162 = vld [vmem:[#allocation6 + $0x8c] sm:$0xf]
    %v163 = vld [vmem:[#allocation6 + $0x90] sm:$0xf]
    %v164 = vld [vmem:[#allocation6 + $0x94] sm:$0xf]
    %v165 = vld [vmem:[#allocation6 + $0x98] sm:$0xf]
    %v166 = vld [vmem:[#allocation6 + $0x9c] sm:$0xf]
    %v167 = vld [vmem:[#allocation6 + $0xa0] sm:$0xf]
    %v168 = vld [vmem:[#allocation6 + $0xa4] sm:$0xf]
    %v169 = vld [vmem:[#allocation6 + $0xa8] sm:$0xf]
    %v170 = vld [vmem:[#allocation6 + $0xac] sm:$0xf]
    %v171 = vld [vmem:[#allocation6 + $0xb0] sm:$0xf]
    %v172 = vld [vmem:[#allocation6 + $0xb4] sm:$0xf]
    %v173 = vld [vmem:[#allocation6 + $0xb8] sm:$0xf]
    %v174 = vld [vmem:[#allocation6 + $0xbc] sm:$0xf]
    %v175 = vld [vmem:[#allocation6 + $0xc0] sm:$0xf]
    %v176 = vld [vmem:[#allocation6 + $0xc4] sm:$0xf]
    %v177 = vld [vmem:[#allocation6 + $0xc8] sm:$0xf]
    %v178 = vld [vmem:[#allocation6 + $0xcc] sm:$0xf]
    %v179 = vld [vmem:[#allocation6 + $0xd0] sm:$0xf]
    %v180 = vld [vmem:[#allocation6 + $0xd4] sm:$0xf]
    %v181 = vld [vmem:[#allocation6 + $0xd8] sm:$0xf]
    %v182 = vld [vmem:[#allocation6 + $0xdc] sm:$0xf]
    %v183 = vld [vmem:[#allocation6 + $0xe0] sm:$0xf]
    %v184 = vld [vmem:[#allocation6 + $0xe4] sm:$0xf]
    %v185 = vld [vmem:[#allocation6 + $0xe8] sm:$0xf]
    %v186 = vld [vmem:[#allocation6 + $0xec] sm:$0xf]
    %v187 = vld [vmem:[#allocation6 + $0xf0] sm:$0xf]
    %v188 = vld [vmem:[#allocation6 + $0xf4] sm:$0xf]
    %v189 = vld [vmem:[#allocation6 + $0xf8] sm:$0xf]
    %v190 = vld [vmem:[#allocation6 + $0xfc] sm:$0xf]
    %v191 = vld [vmem:[#allocation6 + $0x100] sm:$0xf]
    %v192 = vld [vmem:[#allocation6 + $0x104] sm:$0xf]
    %v193 = vld [vmem:[#allocation6 + $0x108] sm:$0xf]
    %v194 = vld [vmem:[#allocation6 + $0x10c] sm:$0xf]
    %v195 = vld [vmem:[#allocation6 + $0x110] sm:$0xf]
    %v196 = vld [vmem:[#allocation6 + $0x114] sm:$0xf]
    %v197 = vld [vmem:[#allocation6 + $0x118] sm:$0xf]
    %v198 = vld [vmem:[#allocation6 + $0x11c] sm:$0xf]
    %v199 = vld [vmem:[#allocation6 + $0x120] sm:$0xf]
    %v200 = vld [vmem:[#allocation6 + $0x124] sm:$0xf]
    %v201 = vld [vmem:[#allocation6 + $0x128] sm:$0xf]
    %v202 = vld [vmem:[#allocation6 + $0x12c] sm:$0xf]
    %v203 = vld [vmem:[#allocation6 + $0x130] sm:$0xf]
    %v204 = vld [vmem:[#allocation6 + $0x134] sm:$0xf]
    %v205 = vld [vmem:[#allocation6 + $0x138] sm:$0xf]
    %v206 = vld [vmem:[#allocation6 + $0x13c] sm:$0xf]
    %v207 = vld [vmem:[#allocation6 + $0x140] sm:$0xf]
    %v208 = vld [vmem:[#allocation6 + $0x144] sm:$0xf]
    %v209 = vld [vmem:[#allocation6 + $0x148] sm:$0xf]
    %v210 = vld [vmem:[#allocation6 + $0x14c] sm:$0xf]
    %v211 = vld [vmem:[#allocation6 + $0x150] sm:$0xf]
    %v212 = vld [vmem:[#allocation6 + $0x154] sm:$0xf]
    %v213 = vld [vmem:[#allocation6 + $0x158] sm:$0xf]
    %v214 = vld [vmem:[#allocation6 + $0x15c] sm:$0xf]
    %v215 = vld [vmem:[#allocation6 + $0x160] sm:$0xf]
    %v216 = vld [vmem:[#allocation6 + $0x164] sm:$0xf]
    %v217 = vld [vmem:[#allocation6 + $0x168] sm:$0xf]
    %v218 = vld [vmem:[#allocation6 + $0x16c] sm:$0xf]
    %v219 = vld [vmem:[#allocation6 + $0x170] sm:$0xf]
    %v220 = vld [vmem:[#allocation6 + $0x174] sm:$0xf]
    %v221 = vld [vmem:[#allocation6 + $0x178] sm:$0xf]
    %v222 = vld [vmem:[#allocation6 + $0x17c] sm:$0xf]
    %v223 = vld [vmem:[%s3] sm:$0x1]
    %v225 = vlaneseq
    %v226 = vshrl.u32 %v225, 7
    %v227 = vsub.s32 0, %v226
    %v228 = vrot.slane %v223, %v227
    %v326 = vunpack.c.l.b16 %v127
    %v327 = vunpack.c.l.b16 %v128
    %v328 = vunpack.c.l.b16 %v129
    %v329 = vunpack.c.l.b16 %v130
    %v330 = vunpack.c.l.b16 %v131
    %v331 = vunpack.c.l.b16 %v132
    %v332 = vunpack.c.l.b16 %v133
    %v333 = vunpack.c.l.b16 %v134
    %v334 = vunpack.c.l.b16 %v135
    %v335 = vunpack.c.l.b16 %v136
    %v336 = vunpack.c.l.b16 %v137
    %v337 = vunpack.c.l.b16 %v138
    %v338 = vunpack.c.l.b16 %v139
    %v339 = vunpack.c.l.b16 %v140
    %v340 = vunpack.c.l.b16 %v141
    %v341 = vunpack.c.l.b16 %v142
    %v342 = vunpack.c.l.b16 %v143
    %v343 = vunpack.c.l.b16 %v144
    %v344 = vunpack.c.l.b16 %v145
    %v345 = vunpack.c.l.b16 %v146
    %v346 = vunpack.c.l.b16 %v147
    %v347 = vunpack.c.l.b16 %v148
    %v348 = vunpack.c.l.b16 %v149
    %v349 = vunpack.c.l.b16 %v150
    %v350 = vunpack.c.l.b16 %v151
    %v351 = vunpack.c.l.b16 %v152
    %v352 = vunpack.c.l.b16 %v153
    %v353 = vunpack.c.l.b16 %v154
    %v354 = vunpack.c.l.b16 %v155
    %v355 = vunpack.c.l.b16 %v156
    %v356 = vunpack.c.l.b16 %v157
    %v357 = vunpack.c.l.b16 %v158
    %v358 = vunpack.c.l.b16 %v159
    %v359 = vunpack.c.l.b16 %v160
    %v360 = vunpack.c.l.b16 %v161
    %v361 = vunpack.c.l.b16 %v162
    %v362 = vunpack.c.l.b16 %v163
    %v363 = vunpack.c.l.b16 %v164
    %v364 = vunpack.c.l.b16 %v165
    %v365 = vunpack.c.l.b16 %v166
    %v366 = vunpack.c.l.b16 %v167
    %v367 = vunpack.c.l.b16 %v168
    %v368 = vunpack.c.l.b16 %v169
    %v369 = vunpack.c.l.b16 %v170
    %v370 = vunpack.c.l.b16 %v171
    %v371 = vunpack.c.l.b16 %v172
    %v372 = vunpack.c.l.b16 %v173
    %v373 = vunpack.c.l.b16 %v174
    %v374 = vunpack.c.l.b16 %v175
    %v375 = vunpack.c.l.b16 %v176
    %v376 = vunpack.c.l.b16 %v177
    %v377 = vunpack.c.l.b16 %v178
    %v378 = vunpack.c.l.b16 %v179
    %v379 = vunpack.c.l.b16 %v180
    %v380 = vunpack.c.l.b16 %v181
    %v381 = vunpack.c.l.b16 %v182
    %v382 = vunpack.c.l.b16 %v183
    %v383 = vunpack.c.l.b16 %v184
    %v384 = vunpack.c.l.b16 %v185
    %v385 = vunpack.c.l.b16 %v186
    %v386 = vunpack.c.l.b16 %v187
    %v387 = vunpack.c.l.b16 %v188
    %v388 = vunpack.c.l.b16 %v189
    %v389 = vunpack.c.l.b16 %v190
    %v390 = vunpack.c.l.b16 %v191
    %v391 = vunpack.c.l.b16 %v192
    %v392 = vunpack.c.l.b16 %v193
    %v393 = vunpack.c.l.b16 %v194
    %v394 = vunpack.c.l.b16 %v195
    %v395 = vunpack.c.l.b16 %v196
    %v396 = vunpack.c.l.b16 %v197
    %v397 = vunpack.c.l.b16 %v198
    %v398 = vunpack.c.l.b16 %v199
    %v399 = vunpack.c.l.b16 %v200
    %v400 = vunpack.c.l.b16 %v201
    %v401 = vunpack.c.l.b16 %v202
    %v402 = vunpack.c.l.b16 %v203
    %v403 = vunpack.c.l.b16 %v204
    %v404 = vunpack.c.l.b16 %v205
    %v405 = vunpack.c.l.b16 %v206
    %v406 = vunpack.c.l.b16 %v207
    %v407 = vunpack.c.l.b16 %v208
    %v408 = vunpack.c.l.b16 %v209
    %v409 = vunpack.c.l.b16 %v210
    %v410 = vunpack.c.l.b16 %v211
    %v411 = vunpack.c.l.b16 %v212
    %v412 = vunpack.c.l.b16 %v213
    %v413 = vunpack.c.l.b16 %v214
    %v414 = vunpack.c.l.b16 %v215
    %v415 = vunpack.c.l.b16 %v216
    %v416 = vunpack.c.l.b16 %v217
    %v417 = vunpack.c.l.b16 %v218
    %v418 = vunpack.c.l.b16 %v219
    %v419 = vunpack.c.l.b16 %v220
    %v420 = vunpack.c.l.b16 %v221
    %v421 = vunpack.c.l.b16 %v222
    %v422 = vpack.c.b16 %v327, %v326
    %v423 = vpack.c.b16 %v329, %v328
    %v424 = vpack.c.b16 %v331, %v330
    %v425 = vpack.c.b16 %v333, %v332
    %v426 = vpack.c.b16 %v335, %v334
    %v427 = vpack.c.b16 %v337, %v336
    %v428 = vpack.c.b16 %v339, %v338
    %v429 = vpack.c.b16 %v341, %v340
    %v430 = vpack.c.b16 %v343, %v342
    %v431 = vpack.c.b16 %v345, %v344
    %v432 = vpack.c.b16 %v347, %v346
    %v433 = vpack.c.b16 %v349, %v348
    %v434 = vpack.c.b16 %v351, %v350
    %v435 = vpack.c.b16 %v353, %v352
    %v436 = vpack.c.b16 %v355, %v354
    %v437 = vpack.c.b16 %v357, %v356
    %v438 = vpack.c.b16 %v359, %v358
    %v439 = vpack.c.b16 %v361, %v360
    %v440 = vpack.c.b16 %v363, %v362
    %v441 = vpack.c.b16 %v365, %v364
    %v442 = vpack.c.b16 %v367, %v366
    %v443 = vpack.c.b16 %v369, %v368
    %v444 = vpack.c.b16 %v371, %v370
    %v445 = vpack.c.b16 %v373, %v372
    %v446 = vpack.c.b16 %v375, %v374
    %v447 = vpack.c.b16 %v377, %v376
    %v448 = vpack.c.b16 %v379, %v378
    %v449 = vpack.c.b16 %v381, %v380
    %v450 = vpack.c.b16 %v383, %v382
    %v451 = vpack.c.b16 %v385, %v384
    %v452 = vpack.c.b16 %v387, %v386
    %v453 = vpack.c.b16 %v389, %v388
    %v454 = vpack.c.b16 %v391, %v390
    %v455 = vpack.c.b16 %v393, %v392
    %v456 = vpack.c.b16 %v395, %v394
    %v457 = vpack.c.b16 %v397, %v396
    %v458 = vpack.c.b16 %v399, %v398
    %v459 = vpack.c.b16 %v401, %v400
    %v460 = vpack.c.b16 %v403, %v402
    %v461 = vpack.c.b16 %v405, %v404
    %v462 = vpack.c.b16 %v407, %v406
    %v463 = vpack.c.b16 %v409, %v408
    %v464 = vpack.c.b16 %v411, %v410
    %v465 = vpack.c.b16 %v413, %v412
    %v466 = vpack.c.b16 %v415, %v414
    %v467 = vpack.c.b16 %v417, %v416
    %v468 = vpack.c.b16 %v419, %v418
    %v469 = vpack.c.b16 %v421, %v420
    %518 = vmatprep.subr.bf16.mxu0 0
    %519 = vmatpush1.bf16.msra.mxu0 %v422
    %520 = vmatprep.subr.bf16.mxu0 0
    %521 = vmatpush1.bf16.msra.mxu0 %v423
    %522 = vmatprep.subr.bf16.mxu0 0
    %523 = vmatpush1.bf16.msra.mxu0 %v424
    %524 = vmatprep.subr.bf16.mxu0 0
    %525 = vmatpush1.bf16.msra.mxu0 %v425
    %526 = vmatprep.subr.bf16.mxu0 0
    %527 = vmatpush1.bf16.msra.mxu0 %v426
    %528 = vmatprep.subr.bf16.mxu0 0
    %529 = vmatpush1.bf16.msra.mxu0 %v427
    %530 = vmatprep.subr.bf16.mxu0 0
    %531 = vmatpush1.bf16.msra.mxu0 %v428
    %532 = vmatprep.subr.bf16.mxu0 0
    %533 = vmatpush1.bf16.msra.mxu0 %v429
    %534 = vmatprep.subr.bf16.mxu0 0
    %535 = vmatpush1.bf16.msra.mxu0 %v430
    %536 = vmatprep.subr.bf16.mxu0 0
    %537 = vmatpush1.bf16.msra.mxu0 %v431
    %538 = vmatprep.subr.bf16.mxu0 0
    %539 = vmatpush1.bf16.msra.mxu0 %v432
    %540 = vmatprep.subr.bf16.mxu0 0
    %541 = vmatpush1.bf16.msra.mxu0 %v433
    %542 = vmatprep.subr.bf16.mxu0 0
    %543 = vmatpush1.bf16.msra.mxu0 %v434
    %544 = vmatprep.subr.bf16.mxu0 0
    %545 = vmatpush1.bf16.msra.mxu0 %v435
    %546 = vmatprep.subr.bf16.mxu0 0
    %547 = vmatpush1.bf16.msra.mxu0 %v436
    %548 = vmatprep.subr.bf16.mxu0 0
    %549 = vmatpush1.bf16.msra.mxu0 %v437
    %550 = vmatprep.mubr.bf16.mxu0 %v122
    %551 = vmatmul.mubr.bf16.gmra.mrb[0].mxu0 %v121
    %v552 = vpop.f32.mrb[0].mxu0
    %v553 = vadd.f32 %v228, %v552
    %v554 = vpop.f32.mrb[0].mxu0
    %v555 = vpop.f32.mrb[0].mxu0
    %v556 = vpop.f32.mrb[0].mxu0
    %557 = vdwg.mxu0
    %558 = vmatprep.subr.bf16.mxu0 0
    %559 = vmatpush1.bf16.msra.mxu0 %v438
    %560 = vmatprep.subr.bf16.mxu0 0
    %561 = vmatpush1.bf16.msra.mxu0 %v439
    %562 = vmatprep.subr.bf16.mxu0 0
    %563 = vmatpush1.bf16.msra.mxu0 %v440
    %564 = vmatprep.subr.bf16.mxu0 0
    %565 = vmatpush1.bf16.msra.mxu0 %v441
    %566 = vmatprep.subr.bf16.mxu0 0
    %567 = vmatpush1.bf16.msra.mxu0 %v442
    %568 = vmatprep.subr.bf16.mxu0 0
    %569 = vmatpush1.bf16.msra.mxu0 %v443
    %570 = vmatprep.subr.bf16.mxu0 0
    %571 = vmatpush1.bf16.msra.mxu0 %v444
    %572 = vmatprep.subr.bf16.mxu0 0
    %573 = vmatpush1.bf16.msra.mxu0 %v445
    %574 = vmatprep.subr.bf16.mxu0 0
    %575 = vmatpush1.bf16.msra.mxu0 %v446
    %576 = vmatprep.subr.bf16.mxu0 0
    %577 = vmatpush1.bf16.msra.mxu0 %v447
    %578 = vmatprep.subr.bf16.mxu0 0
    %579 = vmatpush1.bf16.msra.mxu0 %v448
    %580 = vmatprep.subr.bf16.mxu0 0
    %581 = vmatpush1.bf16.msra.mxu0 %v449
    %582 = vmatprep.subr.bf16.mxu0 0
    %583 = vmatpush1.bf16.msra.mxu0 %v450
    %584 = vmatprep.subr.bf16.mxu0 0
    %585 = vmatpush1.bf16.msra.mxu0 %v451
    %586 = vmatprep.subr.bf16.mxu0 0
    %587 = vmatpush1.bf16.msra.mxu0 %v452
    %588 = vmatprep.subr.bf16.mxu0 0
    %589 = vmatpush1.bf16.msra.mxu0 %v453
    %590 = vmatprep.mubr.bf16.mxu0 %v124
    %591 = vmatmul.mubr.bf16.gmra.mrb[0].mxu0 %v123
    %v592 = vpop.f32.mrb[0].mxu0
    %v593 = vadd.f32 %v553, %v592
    %v594 = vpop.f32.mrb[0].mxu0
    %v595 = vpop.f32.mrb[0].mxu0
    %v596 = vpop.f32.mrb[0].mxu0
    %597 = vdwg.mxu0
    %598 = vmatprep.subr.bf16.mxu0 0
    %599 = vmatpush1.bf16.msra.mxu0 %v454
    %600 = vmatprep.subr.bf16.mxu0 0
    %601 = vmatpush1.bf16.msra.mxu0 %v455
    %602 = vmatprep.subr.bf16.mxu0 0
    %603 = vmatpush1.bf16.msra.mxu0 %v456
    %604 = vmatprep.subr.bf16.mxu0 0
    %605 = vmatpush1.bf16.msra.mxu0 %v457
    %606 = vmatprep.subr.bf16.mxu0 0
    %607 = vmatpush1.bf16.msra.mxu0 %v458
    %608 = vmatprep.subr.bf16.mxu0 0
    %609 = vmatpush1.bf16.msra.mxu0 %v459
    %610 = vmatprep.subr.bf16.mxu0 0
    %611 = vmatpush1.bf16.msra.mxu0 %v460
    %612 = vmatprep.subr.bf16.mxu0 0
    %613 = vmatpush1.bf16.msra.mxu0 %v461
    %614 = vmatprep.subr.bf16.mxu0 0
    %615 = vmatpush1.bf16.msra.mxu0 %v462
    %616 = vmatprep.subr.bf16.mxu0 0
    %617 = vmatpush1.bf16.msra.mxu0 %v463
    %618 = vmatprep.subr.bf16.mxu0 0
    %619 = vmatpush1.bf16.msra.mxu0 %v464
    %620 = vmatprep.subr.bf16.mxu0 0
    %621 = vmatpush1.bf16.msra.mxu0 %v465
    %622 = vmatprep.subr.bf16.mxu0 0
    %623 = vmatpush1.bf16.msra.mxu0 %v466
    %624 = vmatprep.subr.bf16.mxu0 0
    %625 = vmatpush1.bf16.msra.mxu0 %v467
    %626 = vmatprep.subr.bf16.mxu0 0
    %627 = vmatpush1.bf16.msra.mxu0 %v468
    %628 = vmatprep.subr.bf16.mxu0 0
    %629 = vmatpush1.bf16.msra.mxu0 %v469
    %630 = vmatprep.mubr.bf16.mxu0 %v126
    %631 = vmatmul.mubr.bf16.gmra.mrb[0].mxu0 %v125
    %v632 = vpop.f32.mrb[0].mxu0
    %v633 = vadd.f32 %v593, %v632
    %v634 = vpop.f32.mrb[0].mxu0
    %v635 = vpop.f32.mrb[0].mxu0
    %v636 = vpop.f32.mrb[0].mxu0
    %637 = vdwg.mxu0
    %v638 = vpack.c.bf16 %v633, %v633
    %639 = vst [vmem:[#allocation9] sm:$0xf] %v638
    // Predicated region
    $region43: #{tpu_custom_call.1} parent=1 // pred_check
      _
    $region44: #{tpu_custom_call.1} parent=1 // pred_check_branch
      %641 = sbr.rel (0) target = $region46
    $region45: #{tpu_custom_call.1} parent=1 // pred_region
      %s643 = ssub.s32 64, 64
      %644 = vsyncadd [#allocation8], %s643
      %s646 = sshll.u32 [#allocation9], 4
      %s647 = int_to_ptr.vmem [resolvable:$true] %s646
      %649 = dma.vmem_to_hbm [thread:$0]  %s647, 64, %s4, [#allocation8]
    $region46: #{tpu_custom_call.1} parent=1 // pred_fallthru
      _
    // Predicated region
    $region47: #{tpu_custom_call.1} parent=1 // pred_check
      _
    $region48: #{tpu_custom_call.1} parent=1 // pred_check_branch
      %651 = sbr.rel (0) target = $region50
    $region49: #{tpu_custom_call.1} parent=1 // pred_region
      %652 = dma.done [#allocation8], 64
    $region50: #{tpu_custom_call.1} parent=1 // pred_fallthru
      _
    %653 = vsyncpa [#allocation7], 1
    %654 = vsyncpa [#allocation8], 1
  %655 = vsyncmov [#allocation3]
  %s656 = vpop.sfrf %655
  %p657 = scmp.eq.s32.totalorder %s656, 0
  %p658 = pneg %p657
  %660 = shalt.err (%p658)
  %s661 = scalar_lea.sflag [#allocation3], 1
  %662 = vsyncmov %s661
  %s663 = vpop.sfrf %662
  %p664 = scmp.eq.s32.totalorder %s663, 0
  %p665 = pneg %p664
  %667 = shalt.err (%p665)

</llo_original>
